<compile_context>
chip_gen: v7x
topology: tpu7x:2x2x1
jax: 0.10.0
libtpu: 0.0.40
codegen_flags: <defaults>
</compile_context>

<pallas_src>
import functools

import jax
import jax.numpy as jnp
from jax import lax
from jax.experimental import pallas as pl
from jax.experimental.pallas import tpu as pltpu


def _mha_kernel(x_ref, wqkv_ref, wu_ref, o_ref, *, heads):
    x = x_ref[0]                                   # (T, E)
    e = x.shape[-1]
    he = heads * e

    # One lane-dense MXU matmul produces q/k/v for every head at once.
    # (scale 1/E^0.25 is already folded into the q and k weight blocks)
    qkv = jnp.dot(x, wqkv_ref[...], preferred_element_type=jnp.float32)  # (T, 3*H*E)

    attn_parts = []
    for h in range(heads):                         # static unroll, H is small
        q = qkv[:, h * e:(h + 1) * e]
        k = qkv[:, he + h * e:he + (h + 1) * e]
        v = qkv[:, 2 * he + h * e:2 * he + (h + 1) * e]

        # (T, T) attention logits: contract last dims directly (no k.T).
        s = lax.dot_general(q, k, (((1,), (1,)), ((), ())),
                            preferred_element_type=jnp.float32)
        s = s - jnp.max(s, axis=-1, keepdims=True)
        p = jnp.exp(s)
        p = p * pl.reciprocal(jnp.sum(p, axis=-1, keepdims=True), approx=True)
        attn_parts.append(jnp.dot(p, v, preferred_element_type=jnp.float32))

    # (T, H*E) lane-dense slab; single fused head-sum contraction and a single
    # write of the whole (T, E) output tile (no per-head read-modify-write).
    attn = jnp.concatenate(attn_parts, axis=-1)
    o_ref[0] = jnp.dot(attn, wu_ref[...],
                       preferred_element_type=jnp.float32).astype(o_ref.dtype)


@functools.partial(jax.jit, static_argnames=("heads",))
def multi_head_attention(x, wqkv, wu, *, heads):
    """x: (B, T, E); wqkv: (E, 3*H*E) packed q|k|v weights (scale folded in);
    wu: (H*E, E) packed unify weights."""
    b, t, e = x.shape

    grid_spec = pltpu.PrefetchScalarGridSpec(
        num_scalar_prefetch=0,
        grid=(b,),
        in_specs=[
            pl.BlockSpec((1, t, e), lambda bi: (bi, 0, 0)),
            # Full weight stacks as single resident blocks (constant index_map
            # => fetched once, kept in VMEM across all batch steps).
            pl.BlockSpec((e, 3 * heads * e), lambda bi: (0, 0)),
            pl.BlockSpec((heads * e, e), lambda bi: (0, 0)),
        ],
        out_specs=pl.BlockSpec((1, t, e), lambda bi: (bi, 0, 0)),
    )

    return pl.pallas_call(
        functools.partial(_mha_kernel, heads=heads),
        out_shape=jax.ShapeDtypeStruct((b, t, e), jnp.float32),
        grid_spec=grid_spec,
        compiler_params=pltpu.CompilerParams(
            dimension_semantics=("parallel",)),
    )(x, wqkv, wu)


# ---------------------------------------------------------------------------
# Host-side weight packing from the PyTorch nn.Linear layouts.
# ---------------------------------------------------------------------------
def pack_qkv_weights(wq_torch, wk_torch, wv_torch, heads, e):
    # nn.Linear(E, H*E).weight is (H*E, E); y = x @ W.T, head h uses output
    # columns [h*E:(h+1)*E].  Pack as (E, 3*H*E) = [Wq.T*s | Wk.T*s | Wv.T]
    # with the 1/E^0.25 scale folded into the q and k blocks.
    scale = 1.0 / (float(e) ** 0.25)
    return jnp.concatenate(
        [wq_torch.T * scale, wk_torch.T * scale, wv_torch.T], axis=1)


def pack_unify_weight(wu_torch):
    # nn.Linear(H*E, E).weight is (E, H*E); y = a @ W.T with a = concat over
    # heads (head-major), so the packed matrix is simply W.T of shape (H*E, E).
    return wu_torch.T


# ---------------------------------------------------------------------------
# Pure-JAX reference replicating the PyTorch forward exactly (torch layouts).
# ---------------------------------------------------------------------------
def _reference(x, wq_t, wk_t, wv_t, wu_t, heads):
    b, t, e = x.shape
    scale = 1.0 / (float(e) ** 0.25)
    q = (x @ wq_t.T).reshape(b, t, heads, e).transpose(0, 2, 1, 3) * scale
    k = (x @ wk_t.T).reshape(b, t, heads, e).transpose(0, 2, 1, 3) * scale
    v = (x @ wv_t.T).reshape(b, t, heads, e).transpose(0, 2, 1, 3)
    dot = jnp.einsum("bhte,bhse->bhts", q, k)
    p = jax.nn.softmax(dot, axis=-1)
    attn = jnp.einsum("bhts,bhse->bhte", p, v)
    attn = attn.transpose(0, 2, 1, 3).reshape(b, t, heads * e)
    return attn @ wu_t.T


if __name__ == "__main__":
    B, T, E, H = 2, 8, 32, 4

    key = jax.random.PRNGKey(0)
    kx, kq, kk, kv, ku = jax.random.split(key, 5)

    x = jax.random.normal(kx, (B, T, E), dtype=jnp.float32)

    # Deterministic synthetic weights in PyTorch nn.Linear layout (out, in).
    std = 1.0 / (E ** 0.5)
    wq_t = jax.random.normal(kq, (H * E, E), dtype=jnp.float32) * std
    wk_t = jax.random.normal(kk, (H * E, E), dtype=jnp.float32) * std
    wv_t = jax.random.normal(kv, (H * E, E), dtype=jnp.float32) * std
    wu_t = jax.random.normal(ku, (E, H * E), dtype=jnp.float32) * std

    wqkv = pack_qkv_weights(wq_t, wk_t, wv_t, H, E)
    wu = pack_unify_weight(wu_t)

    out = multi_head_attention(x, wqkv, wu, heads=H)
    out = jax.block_until_ready(out)

    ref = _reference(x, wq_t, wk_t, wv_t, wu_t, H)
    assert out.shape == (B, T, E)
    # Slightly loose tolerance to accommodate the approximate (EUP) reciprocal
    # used for the softmax denominator.
    assert jnp.allclose(out, ref, atol=5e-3, rtol=5e-3), "mismatch vs reference"

    print("KERNEL_OK")
</pallas_src>

<mosaic_0001>
module attributes {stable_mosaic.version = 11 : i64} {
  func.func @_mha_kernel(%arg0: i32, %arg1: memref<1x8x32xf32, #tpu.memory_space<vmem>>, %arg2: memref<32x384xf32, #tpu.memory_space<vmem>>, %arg3: memref<128x32xf32, #tpu.memory_space<vmem>>, %arg4: memref<1x8x32xf32, #tpu.memory_space<vmem>>) attributes {dimension_semantics = [#tpu.dimension_semantics<parallel>], iteration_bounds = array<i64: 2>, scalar_prefetch = 0 : i64, scratch_operands = 0 : i64, tpu.core_type = #tpu.core_type<tc>, window_params = [{transform_indices = @transform_0, window_bounds = array<i64: 1, 8, 32>}, {pipeline_mode = #tpu.pipeline_mode<synchronous>, transform_indices = @transform_1, window_bounds = array<i64: 32, 384>}, {pipeline_mode = #tpu.pipeline_mode<synchronous>, transform_indices = @transform_2, window_bounds = array<i64: 128, 32>}, {transform_indices = @transform_3, window_bounds = array<i64: 1, 8, 32>}]} {
    %c0 = arith.constant 0 : index
    %c0_0 = arith.constant 0 : index
    %c0_1 = arith.constant 0 : index
    %0 = vector.load %arg1[%c0, %c0_0, %c0_1] : memref<1x8x32xf32, #tpu.memory_space<vmem>>, vector<1x8x32xf32>
    %1 = vector.shape_cast %0 : vector<1x8x32xf32> to vector<8x32xf32>
    %c0_2 = arith.constant 0 : index
    %c0_3 = arith.constant 0 : index
    %2 = vector.load %arg2[%c0_2, %c0_3] : memref<32x384xf32, #tpu.memory_space<vmem>>, vector<32x384xf32>
    %cst = arith.constant dense<0.000000e+00> : vector<8x384xf32>
    %3 = tpu.matmul %1, %2, %cst {dimension_numbers = #tpu.dot_dimension_numbers<[1], [0], [0], [1], [0, 0, 1, 1], [], []>} : vector<8x32xf32>, vector<32x384xf32>, vector<8x384xf32> -> vector<8x384xf32>
    %4 = vector.extract_strided_slice %3 {offsets = [0, 0], sizes = [8, 32], strides = [1, 1]} : vector<8x384xf32> to vector<8x32xf32>
    %5 = vector.extract_strided_slice %3 {offsets = [0, 128], sizes = [8, 32], strides = [1, 1]} : vector<8x384xf32> to vector<8x32xf32>
    %6 = vector.extract_strided_slice %3 {offsets = [0, 256], sizes = [8, 32], strides = [1, 1]} : vector<8x384xf32> to vector<8x32xf32>
    %cst_4 = arith.constant dense<0.000000e+00> : vector<8x8xf32>
    %7 = tpu.matmul %4, %5, %cst_4 {dimension_numbers = #tpu.dot_dimension_numbers<[1], [1], [0], [0], [0, 0, 1, 0], [], []>} : vector<8x32xf32>, vector<8x32xf32>, vector<8x8xf32> -> vector<8x8xf32>
    %cst_5 = arith.constant dense<0xFF800000> : vector<8xf32>
    %8 = vector.multi_reduction <maximumf>, %7, %cst_5 [1] : vector<8x8xf32> to vector<8xf32>
    %9 = vector.shape_cast %8 : vector<8xf32> to vector<8x1xf32>
    %10 = vector.broadcast %9 : vector<8x1xf32> to vector<8x8xf32>
    %11 = arith.subf %7, %10 : vector<8x8xf32>
    %12 = math.exp %11 : vector<8x8xf32>
    %cst_6 = arith.constant dense<0.000000e+00> : vector<8xf32>
    %13 = vector.multi_reduction <add>, %12, %cst_6 [1] : vector<8x8xf32> to vector<8xf32>
    %14 = vector.shape_cast %13 : vector<8xf32> to vector<8x1xf32>
    %15 = tpu.reciprocal %14 {approx = true} : vector<8x1xf32> -> vector<8x1xf32>
    %16 = vector.broadcast %15 : vector<8x1xf32> to vector<8x8xf32>
    %17 = arith.mulf %12, %16 : vector<8x8xf32>
    %cst_7 = arith.constant dense<0.000000e+00> : vector<8x32xf32>
    %18 = tpu.matmul %17, %6, %cst_7 {dimension_numbers = #tpu.dot_dimension_numbers<[1], [0], [0], [1], [0, 0, 1, 1], [], []>} : vector<8x8xf32>, vector<8x32xf32>, vector<8x32xf32> -> vector<8x32xf32>
    %19 = vector.extract_strided_slice %3 {offsets = [0, 32], sizes = [8, 32], strides = [1, 1]} : vector<8x384xf32> to vector<8x32xf32>
    %20 = vector.extract_strided_slice %3 {offsets = [0, 160], sizes = [8, 32], strides = [1, 1]} : vector<8x384xf32> to vector<8x32xf32>
    %21 = vector.extract_strided_slice %3 {offsets = [0, 288], sizes = [8, 32], strides = [1, 1]} : vector<8x384xf32> to vector<8x32xf32>
    %cst_8 = arith.constant dense<0.000000e+00> : vector<8x8xf32>
    %22 = tpu.matmul %19, %20, %cst_8 {dimension_numbers = #tpu.dot_dimension_numbers<[1], [1], [0], [0], [0, 0, 1, 0], [], []>} : vector<8x32xf32>, vector<8x32xf32>, vector<8x8xf32> -> vector<8x8xf32>
    %cst_9 = arith.constant dense<0xFF800000> : vector<8xf32>
    %23 = vector.multi_reduction <maximumf>, %22, %cst_9 [1] : vector<8x8xf32> to vector<8xf32>
    %24 = vector.shape_cast %23 : vector<8xf32> to vector<8x1xf32>
    %25 = vector.broadcast %24 : vector<8x1xf32> to vector<8x8xf32>
    %26 = arith.subf %22, %25 : vector<8x8xf32>
    %27 = math.exp %26 : vector<8x8xf32>
    %cst_10 = arith.constant dense<0.000000e+00> : vector<8xf32>
    %28 = vector.multi_reduction <add>, %27, %cst_10 [1] : vector<8x8xf32> to vector<8xf32>
    %29 = vector.shape_cast %28 : vector<8xf32> to vector<8x1xf32>
    %30 = tpu.reciprocal %29 {approx = true} : vector<8x1xf32> -> vector<8x1xf32>
    %31 = vector.broadcast %30 : vector<8x1xf32> to vector<8x8xf32>
    %32 = arith.mulf %27, %31 : vector<8x8xf32>
    %cst_11 = arith.constant dense<0.000000e+00> : vector<8x32xf32>
    %33 = tpu.matmul %32, %21, %cst_11 {dimension_numbers = #tpu.dot_dimension_numbers<[1], [0], [0], [1], [0, 0, 1, 1], [], []>} : vector<8x8xf32>, vector<8x32xf32>, vector<8x32xf32> -> vector<8x32xf32>
    %34 = vector.extract_strided_slice %3 {offsets = [0, 64], sizes = [8, 32], strides = [1, 1]} : vector<8x384xf32> to vector<8x32xf32>
    %35 = vector.extract_strided_slice %3 {offsets = [0, 192], sizes = [8, 32], strides = [1, 1]} : vector<8x384xf32> to vector<8x32xf32>
    %36 = vector.extract_strided_slice %3 {offsets = [0, 320], sizes = [8, 32], strides = [1, 1]} : vector<8x384xf32> to vector<8x32xf32>
    %cst_12 = arith.constant dense<0.000000e+00> : vector<8x8xf32>
    %37 = tpu.matmul %34, %35, %cst_12 {dimension_numbers = #tpu.dot_dimension_numbers<[1], [1], [0], [0], [0, 0, 1, 0], [], []>} : vector<8x32xf32>, vector<8x32xf32>, vector<8x8xf32> -> vector<8x8xf32>
    %cst_13 = arith.constant dense<0xFF800000> : vector<8xf32>
    %38 = vector.multi_reduction <maximumf>, %37, %cst_13 [1] : vector<8x8xf32> to vector<8xf32>
    %39 = vector.shape_cast %38 : vector<8xf32> to vector<8x1xf32>
    %40 = vector.broadcast %39 : vector<8x1xf32> to vector<8x8xf32>
    %41 = arith.subf %37, %40 : vector<8x8xf32>
    %42 = math.exp %41 : vector<8x8xf32>
    %cst_14 = arith.constant dense<0.000000e+00> : vector<8xf32>
    %43 = vector.multi_reduction <add>, %42, %cst_14 [1] : vector<8x8xf32> to vector<8xf32>
    %44 = vector.shape_cast %43 : vector<8xf32> to vector<8x1xf32>
    %45 = tpu.reciprocal %44 {approx = true} : vector<8x1xf32> -> vector<8x1xf32>
    %46 = vector.broadcast %45 : vector<8x1xf32> to vector<8x8xf32>
    %47 = arith.mulf %42, %46 : vector<8x8xf32>
    %cst_15 = arith.constant dense<0.000000e+00> : vector<8x32xf32>
    %48 = tpu.matmul %47, %36, %cst_15 {dimension_numbers = #tpu.dot_dimension_numbers<[1], [0], [0], [1], [0, 0, 1, 1], [], []>} : vector<8x8xf32>, vector<8x32xf32>, vector<8x32xf32> -> vector<8x32xf32>
    %49 = vector.extract_strided_slice %3 {offsets = [0, 96], sizes = [8, 32], strides = [1, 1]} : vector<8x384xf32> to vector<8x32xf32>
    %50 = vector.extract_strided_slice %3 {offsets = [0, 224], sizes = [8, 32], strides = [1, 1]} : vector<8x384xf32> to vector<8x32xf32>
    %51 = vector.extract_strided_slice %3 {offsets = [0, 352], sizes = [8, 32], strides = [1, 1]} : vector<8x384xf32> to vector<8x32xf32>
    %cst_16 = arith.constant dense<0.000000e+00> : vector<8x8xf32>
    %52 = tpu.matmul %49, %50, %cst_16 {dimension_numbers = #tpu.dot_dimension_numbers<[1], [1], [0], [0], [0, 0, 1, 0], [], []>} : vector<8x32xf32>, vector<8x32xf32>, vector<8x8xf32> -> vector<8x8xf32>
    %cst_17 = arith.constant dense<0xFF800000> : vector<8xf32>
    %53 = vector.multi_reduction <maximumf>, %52, %cst_17 [1] : vector<8x8xf32> to vector<8xf32>
    %54 = vector.shape_cast %53 : vector<8xf32> to vector<8x1xf32>
    %55 = vector.broadcast %54 : vector<8x1xf32> to vector<8x8xf32>
    %56 = arith.subf %52, %55 : vector<8x8xf32>
    %57 = math.exp %56 : vector<8x8xf32>
    %cst_18 = arith.constant dense<0.000000e+00> : vector<8xf32>
    %58 = vector.multi_reduction <add>, %57, %cst_18 [1] : vector<8x8xf32> to vector<8xf32>
    %59 = vector.shape_cast %58 : vector<8xf32> to vector<8x1xf32>
    %60 = tpu.reciprocal %59 {approx = true} : vector<8x1xf32> -> vector<8x1xf32>
    %61 = vector.broadcast %60 : vector<8x1xf32> to vector<8x8xf32>
    %62 = arith.mulf %57, %61 : vector<8x8xf32>
    %cst_19 = arith.constant dense<0.000000e+00> : vector<8x32xf32>
    %63 = tpu.matmul %62, %51, %cst_19 {dimension_numbers = #tpu.dot_dimension_numbers<[1], [0], [0], [1], [0, 0, 1, 1], [], []>} : vector<8x8xf32>, vector<8x32xf32>, vector<8x32xf32> -> vector<8x32xf32>
    %64 = tpu.concatenate %18, %33, %48, %63 in 1 : vector<8x32xf32>, vector<8x32xf32>, vector<8x32xf32>, vector<8x32xf32> -> vector<8x128xf32>
    %c0_20 = arith.constant 0 : index
    %c0_21 = arith.constant 0 : index
    %65 = vector.load %arg3[%c0_20, %c0_21] : memref<128x32xf32, #tpu.memory_space<vmem>>, vector<128x32xf32>
    %cst_22 = arith.constant dense<0.000000e+00> : vector<8x32xf32>
    %66 = tpu.matmul %64, %65, %cst_22 {dimension_numbers = #tpu.dot_dimension_numbers<[1], [0], [0], [1], [0, 0, 1, 1], [], []>} : vector<8x128xf32>, vector<128x32xf32>, vector<8x32xf32> -> vector<8x32xf32>
    %c0_23 = arith.constant 0 : index
    %c0_24 = arith.constant 0 : index
    %c0_25 = arith.constant 0 : index
    %67 = vector.load %arg4[%c0_23, %c0_24, %c0_25] : memref<1x8x32xf32, #tpu.memory_space<vmem>>, vector<1x8x32xf32>
    %68 = vector.shape_cast %67 : vector<1x8x32xf32> to vector<8x32xf32>
    %69 = vector.shape_cast %66 : vector<8x32xf32> to vector<1x8x32xf32>
    tpu.vector_store %arg4[%c0_23, %c0_24, %c0_25], %69 {strides = array<i32>} : memref<1x8x32xf32, #tpu.memory_space<vmem>>, vector<1x8x32xf32>,
    return
  }
  func.func @transform_0(%arg0: i32) -> (i32, i32, i32) {
    %c0_i32 = arith.constant 0 : i32
    %c0_i32_0 = arith.constant 0 : i32
    %c0_i32_1 = arith.constant 0 : i32
    return %arg0, %c0_i32, %c0_i32_0 : i32, i32, i32
  }
  func.func @transform_1(%arg0: i32) -> (i32, i32) {
    %c0_i32 = arith.constant 0 : i32
    %c0_i32_0 = arith.constant 0 : i32
    %c0_i32_1 = arith.constant 0 : i32
    return %c0_i32, %c0_i32_0 : i32, i32
  }
  func.func @transform_2(%arg0: i32) -> (i32, i32) {
    %c0_i32 = arith.constant 0 : i32
    %c0_i32_0 = arith.constant 0 : i32
    %c0_i32_1 = arith.constant 0 : i32
    return %c0_i32, %c0_i32_0 : i32, i32
  }
  func.func @transform_3(%arg0: i32) -> (i32, i32, i32) {
    %c0_i32 = arith.constant 0 : i32
    %c0_i32_0 = arith.constant 0 : i32
    %c0_i32_1 = arith.constant 0 : i32
    return %arg0, %c0_i32, %c0_i32_0 : i32, i32, i32
  }
}

</mosaic_0001>

<llo_original>
// kernel: multi_head_attention.1
$region0: #{multi_head_attention.1}
  #allocation0 [shape = 'u32[]', space=smem, size = 0x4, offset = 0x4, fixed_abs, tag = 'smem constant byte address 0x4 - core index']
  #allocation1 [shape = 'u32[144,128]{1,0:T(1,128)}', space=vmem, size = 0x12000, scoped, tag = 'internal scratch']
  %s0 = inlined_call_operand.vmem [shape: f32[2,8,32], index: 0, kind: input, shape index: {}]
  %s1 = inlined_call_operand.vmem [shape: f32[32,384], index: 1, kind: input, shape index: {}]
  %s2 = inlined_call_operand.vmem [shape: f32[128,32], index: 2, kind: input, shape index: {}]
  %s3 = inlined_call_operand.hbm [shape: f32[2,8,32], index: 3, kind: output, shape index: {}]
  %s4 = sld [smem:[#allocation0]]
  $region45: #{multi_head_attention.1} parent=0
    _
  %s6 = ssub.s32 1, %s4
  %s7 = scalar_select 0, %s6, %s4
  $region1: #{multi_head_attention.1} parent=0
    #allocation2 [shape = 'u8[8192]{0}', space=vmem, size = 0x2000, scoped, tag = 'output window, operand 0']
    #allocation3 [shape = 's32[2]{0}', space=sflag, size = 0x8, scoped, tag = 'scoped memory for multi_head_attention.1']
    %8 = vsyncpa [#allocation3], 0
    %s9 = scalar_lea.sflag [#allocation3], 1
    %10 = vsyncpa %s9, 0
    loop: start=0, step=1, limit=4
    $region2: #{multi_head_attention.1} parent=1 // loop_pre_header
      _
    $region3: #{multi_head_attention.1} parent=1 // loop_header
      %s12 = sphi 0, %s16
      %p13 = scmp.ge.s32.totalorder %s12, 4
      %s22 = sphi 0, %s24
      %s25 = sphi 0, %s22
      %s26 = sphi 0, %s25
      %s42 = sphi 0, %s26
      %s46 = sphi 0, %s46
      %s48 = sphi 0, %s46
      %s49 = sphi 0, %s48
      %s63 = sphi 0, %s49
      %s67 = sphi 0, %s67
      %s69 = sphi 0, %s67
      %s70 = sphi 0, %s69
      %s84 = sphi 0, %s70
      %s90 = sphi 0, %s92
      %s93 = sphi 0, %s90
      %s94 = sphi 0, %s93
      %s110 = sphi 0, %s94
    $region4: #{multi_head_attention.1} parent=1 // loop_header_branch
      %15 = sbr.rel (%p13) target = $region8
    $region5: #{multi_head_attention.1} parent=1 // loop_body
      %s17 = ssub.s32 %s12, 1
      %s18 = ssub.s32 %s12, 2
      %s19 = sadd.s32 %s12, 1
      %s20 = ssub.s32 %s12, %s19
      %p21 = scmp.eq.s32.totalorder %s20, 0
      %s23 = sadd.s32 %s22, 1
      %s24 = scalar_select %p21, %s22, %s23
      %p27 = pneg %p21
      %p28 = scmp.eq.s32.totalorder %s12, 1
      %p29 = por %p27, %p28
      %p30 = scmp.ne.s32.totalorder %s22, %s25
      %p31 = scmp.eq.s32.totalorder %s12, 0
      %p32 = por %p30, %p31
      %p33 = scmp.ne.s32.totalorder %s22, %s25
      %p34 = scmp.eq.s32.totalorder %s17, 1
      %p35 = por %p33, %p34
      %p36 = scmp.ne.s32.totalorder %s25, %s26
      %p37 = scmp.eq.s32.totalorder %s17, 0
      %p38 = por %p36, %p37
      %p39 = scmp.ne.s32.totalorder %s25, %s26
      %p40 = scmp.eq.s32.totalorder %s18, 1
      %p41 = por %p39, %p40
      %p43 = scmp.ne.s32.totalorder %s26, %s42
      %p44 = scmp.eq.s32.totalorder %s18, 0
      %p45 = por %p43, %p44
      %s47 = sadd.s32 %s46, 1
      %p50 = scmp.eq.s32.totalorder %s12, 1
      %p51 = scmp.ne.s32.totalorder %s46, %s48
      %p52 = scmp.eq.s32.totalorder %s12, 0
      %p53 = por %p51, %p52
      %p54 = scmp.ne.s32.totalorder %s46, %s48
      %p55 = scmp.eq.s32.totalorder %s17, 1
      %p56 = por %p54, %p55
      %p57 = scmp.ne.s32.totalorder %s48, %s49
      %p58 = scmp.eq.s32.totalorder %s17, 0
      %p59 = por %p57, %p58
      %p60 = scmp.ne.s32.totalorder %s48, %s49
      %p61 = scmp.eq.s32.totalorder %s18, 1
      %p62 = por %p60, %p61
      %p64 = scmp.ne.s32.totalorder %s49, %s63
      %p65 = scmp.eq.s32.totalorder %s18, 0
      %p66 = por %p64, %p65
      %s68 = sadd.s32 %s67, 1
      %p71 = scmp.eq.s32.totalorder %s12, 1
      %p72 = scmp.ne.s32.totalorder %s67, %s69
      %p73 = scmp.eq.s32.totalorder %s12, 0
      %p74 = por %p72, %p73
      %p75 = scmp.ne.s32.totalorder %s67, %s69
      %p76 = scmp.eq.s32.totalorder %s17, 1
      %p77 = por %p75, %p76
      %p78 = scmp.ne.s32.totalorder %s69, %s70
      %p79 = scmp.eq.s32.totalorder %s17, 0
      %p80 = por %p78, %p79
      %p81 = scmp.ne.s32.totalorder %s69, %s70
      %p82 = scmp.eq.s32.totalorder %s18, 1
      %p83 = por %p81, %p82
      %p85 = scmp.ne.s32.totalorder %s70, %s84
      %p86 = scmp.eq.s32.totalorder %s18, 0
      %p87 = por %p85, %p86
      %s88 = ssub.s32 %s12, %s19
      %p89 = scmp.eq.s32.totalorder %s88, 0
      %s91 = sadd.s32 %s90, 1
      %s92 = scalar_select %p89, %s90, %s91
      %p95 = pneg %p89
      %p96 = scmp.eq.s32.totalorder %s12, 1
      %p97 = por %p95, %p96
      %p98 = scmp.ne.s32.totalorder %s90, %s93
      %p99 = scmp.eq.s32.totalorder %s12, 0
      %p100 = por %p98, %p99
      %p101 = scmp.ne.s32.totalorder %s90, %s93
      %p102 = scmp.eq.s32.totalorder %s17, 1
      %p103 = por %p101, %p102
      %p104 = scmp.ne.s32.totalorder %s93, %s94
      %p105 = scmp.eq.s32.totalorder %s17, 0
      %p106 = por %p104, %p105
      %p107 = scmp.ne.s32.totalorder %s93, %s94
      %p108 = scmp.eq.s32.totalorder %s18, 1
      %p109 = por %p107, %p108
      %p111 = scmp.ne.s32.totalorder %s94, %s110
      %p112 = scmp.eq.s32.totalorder %s18, 0
      %p113 = por %p111, %p112
      %p114 = scmp.le.s32.totalorder 1, %s12
      %p115 = scmp.lt.s32.totalorder %s12, 3
      %p116 = pnand %p114, %p115
      %p117 = pneg %p116
      // Predicated region
      $region9: #{multi_head_attention.1} parent=5 // pred_check
        _
      $region10: #{multi_head_attention.1} parent=5 // pred_check_branch
        %119 = sbr.rel (%p116) target = $region12
      $region11: #{multi_head_attention.1} parent=5 // pred_region
        %s120 = ssub.s32 %s12, 1
        // Predicated region
        $region13: #{multi_head_attention.1} parent=11 // pred_check
          %p121 = pneg %p59
        $region14: #{multi_head_attention.1} parent=11 // pred_check_branch
          %123 = sbr.rel (%p121) target = $region16
        $region15: #{multi_head_attention.1} parent=11 // pred_region
          _
        $region16: #{multi_head_attention.1} parent=11 // pred_fallthru
          _
        // Predicated region
        $region17: #{multi_head_attention.1} parent=11 // pred_check
          %p124 = pneg %p80
        $region18: #{multi_head_attention.1} parent=11 // pred_check_branch
          %126 = sbr.rel (%p124) target = $region20
        $region19: #{multi_head_attention.1} parent=11 // pred_region
          _
        $region20: #{multi_head_attention.1} parent=11 // pred_fallthru
          _
      $region12: #{multi_head_attention.1} parent=5 // pred_fallthru
        _
      %p127 = scmp.lt.s32.totalorder %s12, 2
      // Predicated region
      $region21: #{multi_head_attention.1} parent=5 // pred_check
        %p128 = pneg %p127
      $region22: #{multi_head_attention.1} parent=5 // pred_check_branch
        %130 = sbr.rel (%p128) target = $region24
      $region23: #{multi_head_attention.1} parent=5 // pred_region
        // Predicated region
        $region25: #{multi_head_attention.1} parent=23 // pred_check
          %p131 = pneg %p32
        $region26: #{multi_head_attention.1} parent=23 // pred_check_branch
          %133 = sbr.rel (%p131) target = $region28
        $region27: #{multi_head_attention.1} parent=23 // pred_region
          %p134 = scmp.lt.s32.totalorder %s12, 1
          %s135 = scalar_select %p134, %s12, 1
          %s136 = smul.addr %s135, 8
          %s137 = scalar_lea.vmem %s0, %s136
        $region28: #{multi_head_attention.1} parent=23 // pred_fallthru
          _
      $region24: #{multi_head_attention.1} parent=5 // pred_fallthru
        _
      %p138 = scmp.le.s32.totalorder 1, %s12
      %p139 = scmp.lt.s32.totalorder %s12, 3
      %p140 = pnand %p138, %p139
      %p141 = pneg %p140
      // Predicated region
      $region29: #{multi_head_attention.1} parent=5 // pred_check
        _
      $region30: #{multi_head_attention.1} parent=5 // pred_check_branch
        %143 = sbr.rel (%p140) target = $region32
      $region31: #{multi_head_attention.1} parent=5 // pred_region
        %s144 = ssub.s32 %s12, 1
        %p145 = scmp.lt.s32.totalorder %s17, 1
        %s146 = scalar_select %p145, %s17, 1
        %s147 = smul.addr %s146, 8
        %s148 = scalar_lea.vmem %s0, %s147
        %p149 = pneg %p38
        %p150 = pneg %p35
        %p151 = pneg %p59
        %p152 = pneg %p56
        %p153 = pneg %p80
        %p154 = pneg %p77
        %p155 = pneg %p106
        %p156 = pneg %p103
        %s157 = sand.u32 %s93, 1
        %s158 = scalar_lea.sflag [#allocation3], %s157
        %s159 = sand.u32 %s93, 1
        %s160 = smul.addr %s159, 8
        %s161 = scalar_lea.vmem [#allocation2], %s160
        %p162 = scmp.lt.s32.totalorder %s17, 1
        %s163 = scalar_select %p162, %s17, 1
        %s164 = smul.addr %s163, 8
        %s165 = scalar_lea.vmem %s0, %s164
        %v166 = vld [vmem:[%s165] sm:$0xff]
        %v167 = vld [vmem:[%s1] sm:$0xff]
        %v168 = vld [vmem:[%s1 + $0x8] sm:$0xff]
        %v169 = vld [vmem:[%s1 + $0x10] sm:$0xff]
        %v170 = vld [vmem:[%s1 + $0x18] sm:$0xff]
        %v171 = vld [vmem:[%s1 + $0x20] sm:$0xff]
        %v172 = vld [vmem:[%s1 + $0x28] sm:$0xff]
        %v173 = vld [vmem:[%s1 + $0x30] sm:$0xff]
        %v174 = vld [vmem:[%s1 + $0x38] sm:$0xff]
        %v175 = vld [vmem:[%s1 + $0x40] sm:$0xff]
        %v176 = vld [vmem:[%s1 + $0x48] sm:$0xff]
        %v177 = vld [vmem:[%s1 + $0x50] sm:$0xff]
        %v178 = vld [vmem:[%s1 + $0x58] sm:$0xff]
        %vm179 = vcmask 261120
        %v181 = vsel %vm179, %v166, 0
        %183 = vmatprep.subr.mxu0 %v168
        %184 = vmatpush1.msra.mxu0 %v167
        %185 = vmatprep.subr.mxu0 %v171
        %186 = vmatpush1.msra.mxu0 %v170
        %187 = vmatprep.subr.mxu0 %v174
        %188 = vmatpush1.msra.mxu0 %v173
        %189 = vmatprep.subr.mxu0 %v177
        %190 = vmatpush1.msra.mxu0 %v176
        %191 = vmatprep.subr.mxu0 0.0
        %192 = vmatpush1.msra.mxu0 0.0
        %193 = vmatprep.subr.mxu0 0.0
        %194 = vmatpush1.msra.mxu0 0.0
        %195 = vmatprep.subr.mxu0 0.0
        %196 = vmatpush1.msra.mxu0 0.0
        %197 = vmatprep.subr.mxu0 0.0
        %198 = vmatpush1.msra.mxu0 0.0
        %199 = vmatprep.subr.mxu0 0.0
        %200 = vmatpush1.msra.mxu0 0.0
        %201 = vmatprep.subr.mxu0 0.0
        %202 = vmatpush1.msra.mxu0 0.0
        %203 = vmatprep.subr.mxu0 0.0
        %204 = vmatpush1.msra.mxu0 0.0
        %205 = vmatprep.subr.mxu0 0.0
        %206 = vmatpush1.msra.mxu0 0.0
        %207 = vmatprep.subr.mxu0 0.0
        %208 = vmatpush1.msra.mxu0 0.0
        %209 = vmatprep.subr.mxu0 0.0
        %210 = vmatpush1.msra.mxu0 0.0
        %211 = vmatprep.subr.mxu0 0.0
        %212 = vmatpush1.msra.mxu0 0.0
        %213 = vmatprep.subr.mxu0 0.0
        %214 = vmatpush1.msra.mxu0 0.0
        %215 = vmatprep.subr.mxu0 0.0
        %216 = vmatpush1.msra.mxu0 0.0
        %217 = vmatprep.subr.mxu0 0.0
        %218 = vmatpush1.msra.mxu0 0.0
        %219 = vmatprep.subr.mxu0 0.0
        %220 = vmatpush1.msra.mxu0 0.0
        %221 = vmatprep.subr.mxu0 0.0
        %222 = vmatpush1.msra.mxu0 0.0
        %223 = vmatprep.subr.mxu0 0.0
        %224 = vmatpush1.msra.mxu0 0.0
        %225 = vmatprep.subr.mxu0 0.0
        %226 = vmatpush1.msra.mxu0 0.0
        %227 = vmatprep.subr.mxu0 0.0
        %228 = vmatpush1.msra.mxu0 0.0
        %229 = vmatprep.subr.mxu0 0.0
        %230 = vmatpush1.msra.mxu0 0.0
        %231 = vmatprep.subr.mxu0 0.0
        %232 = vmatpush1.msra.mxu0 0.0
        %233 = vmatprep.subr.mxu0 0.0
        %234 = vmatpush1.msra.mxu0 0.0
        %235 = vmatprep.subr.mxu0 0.0
        %236 = vmatpush1.msra.mxu0 0.0
        %237 = vmatprep.subr.mxu0 0.0
        %238 = vmatpush1.msra.mxu0 0.0
        %239 = vmatprep.subr.mxu0 0.0
        %240 = vmatpush1.msra.mxu0 0.0
        %241 = vmatprep.subr.mxu0 0.0
        %242 = vmatpush1.msra.mxu0 0.0
        %243 = vmatprep.subr.mxu0 0.0
        %244 = vmatpush1.msra.mxu0 0.0
        %245 = vmatprep.subr.mxu0 0.0
        %246 = vmatpush1.msra.mxu0 0.0
        %247 = vmatprep.mubr.f32.mxu0 0.0
        %248 = vmatmul.mubr.f32.gmra.mrb[0].mxu0 %v181
        %v249 = vpop.f32.mrb[0].mxu0
        %v250 = vadd.f32 0.0, %v249
        %v251 = vpop.f32.mrb[0].mxu0
        %v252 = vadd.f32 0.0, %v251
        %253 = vdwg.mxu0
        %254 = vmatprep.subr.mxu0 0.0
        %255 = vmatpush1.msra.mxu0 %v169
        %256 = vmatprep.subr.mxu0 0.0
        %257 = vmatpush1.msra.mxu0 %v172
        %258 = vmatprep.subr.mxu0 0.0
        %259 = vmatpush1.msra.mxu0 %v175
        %260 = vmatprep.subr.mxu0 0.0
        %261 = vmatpush1.msra.mxu0 %v178
        %262 = vmatprep.subr.mxu0 0.0
        %263 = vmatpush1.msra.mxu0 0.0
        %264 = vmatprep.subr.mxu0 0.0
        %265 = vmatpush1.msra.mxu0 0.0
        %266 = vmatprep.subr.mxu0 0.0
        %267 = vmatpush1.msra.mxu0 0.0
        %268 = vmatprep.subr.mxu0 0.0
        %269 = vmatpush1.msra.mxu0 0.0
        %270 = vmatprep.subr.mxu0 0.0
        %271 = vmatpush1.msra.mxu0 0.0
        %272 = vmatprep.subr.mxu0 0.0
        %273 = vmatpush1.msra.mxu0 0.0
        %274 = vmatprep.subr.mxu0 0.0
        %275 = vmatpush1.msra.mxu0 0.0
        %276 = vmatprep.subr.mxu0 0.0
        %277 = vmatpush1.msra.mxu0 0.0
        %278 = vmatprep.subr.mxu0 0.0
        %279 = vmatpush1.msra.mxu0 0.0
        %280 = vmatprep.subr.mxu0 0.0
        %281 = vmatpush1.msra.mxu0 0.0
        %282 = vmatprep.subr.mxu0 0.0
        %283 = vmatpush1.msra.mxu0 0.0
        %284 = vmatprep.subr.mxu0 0.0
        %285 = vmatpush1.msra.mxu0 0.0
        %286 = vmatprep.subr.mxu0 0.0
        %287 = vmatpush1.msra.mxu0 0.0
        %288 = vmatprep.subr.mxu0 0.0
        %289 = vmatpush1.msra.mxu0 0.0
        %290 = vmatprep.subr.mxu0 0.0
        %291 = vmatpush1.msra.mxu0 0.0
        %292 = vmatprep.subr.mxu0 0.0
        %293 = vmatpush1.msra.mxu0 0.0
        %294 = vmatprep.subr.mxu0 0.0
        %295 = vmatpush1.msra.mxu0 0.0
        %296 = vmatprep.subr.mxu0 0.0
        %297 = vmatpush1.msra.mxu0 0.0
        %298 = vmatprep.subr.mxu0 0.0
        %299 = vmatpush1.msra.mxu0 0.0
        %300 = vmatprep.subr.mxu0 0.0
        %301 = vmatpush1.msra.mxu0 0.0
        %302 = vmatprep.subr.mxu0 0.0
        %303 = vmatpush1.msra.mxu0 0.0
        %304 = vmatprep.subr.mxu0 0.0
        %305 = vmatpush1.msra.mxu0 0.0
        %306 = vmatprep.subr.mxu0 0.0
        %307 = vmatpush1.msra.mxu0 0.0
        %308 = vmatprep.subr.mxu0 0.0
        %309 = vmatpush1.msra.mxu0 0.0
        %310 = vmatprep.subr.mxu0 0.0
        %311 = vmatpush1.msra.mxu0 0.0
        %312 = vmatprep.subr.mxu0 0.0
        %313 = vmatpush1.msra.mxu0 0.0
        %314 = vmatprep.subr.mxu0 0.0
        %315 = vmatpush1.msra.mxu0 0.0
        %316 = vmatprep.subr.mxu0 0.0
        %317 = vmatpush1.msra.mxu0 0.0
        %318 = vmatprep.mubr.f32.mxu0 0.0
        %319 = vmatmul.mubr.f32.gmra.mrb[0].mxu0 %v181
        %v320 = vpop.f32.mrb[0].mxu0
        %v321 = vadd.f32 0.0, %v320
        %v322 = vpop.f32.mrb[0].mxu0
        %323 = vdwg.mxu0
        %v325 = vsel %vm179, %v250, 0
        %v328 = vsel %vm179, %v252, 0
        %330 = vmatprep.subr.mxu0 0.0
        %331 = vmatpush1.xpose.msra.mxu0 %v328
        %332 = vmatprep.subr.mxu0 0.0
        %333 = vmatpush1.xpose.msra.mxu0 0.0
        %334 = vmatprep.subr.mxu0 0.0
        %335 = vmatpush1.xpose.msra.mxu0 0.0
        %336 = vmatprep.subr.mxu0 0.0
        %337 = vmatpush1.xpose.msra.mxu0 0.0
        %338 = vmatprep.subr.mxu0 0.0
        %339 = vmatpush1.xpose.msra.mxu0 0.0
        %340 = vmatprep.subr.mxu0 0.0
        %341 = vmatpush1.xpose.msra.mxu0 0.0
        %342 = vmatprep.subr.mxu0 0.0
        %343 = vmatpush1.xpose.msra.mxu0 0.0
        %344 = vmatprep.subr.mxu0 0.0
        %345 = vmatpush1.xpose.msra.mxu0 0.0
        %346 = vmatprep.subr.mxu0 0.0
        %347 = vmatpush1.xpose.msra.mxu0 0.0
        %348 = vmatprep.subr.mxu0 0.0
        %349 = vmatpush1.xpose.msra.mxu0 0.0
        %350 = vmatprep.subr.mxu0 0.0
        %351 = vmatpush1.xpose.msra.mxu0 0.0
        %352 = vmatprep.subr.mxu0 0.0
        %353 = vmatpush1.xpose.msra.mxu0 0.0
        %354 = vmatprep.subr.mxu0 0.0
        %355 = vmatpush1.xpose.msra.mxu0 0.0
        %356 = vmatprep.subr.mxu0 0.0
        %357 = vmatpush1.xpose.msra.mxu0 0.0
        %358 = vmatprep.subr.mxu0 0.0
        %359 = vmatpush1.xpose.msra.mxu0 0.0
        %360 = vmatprep.subr.mxu0 0.0
        %361 = vmatpush1.xpose.msra.mxu0 0.0
        %362 = vmatprep.subr.mxu0 0.0
        %363 = vmatpush1.xpose.msra.mxu0 0.0
        %364 = vmatprep.subr.mxu0 0.0
        %365 = vmatpush1.xpose.msra.mxu0 0.0
        %366 = vmatprep.subr.mxu0 0.0
        %367 = vmatpush1.xpose.msra.mxu0 0.0
        %368 = vmatprep.subr.mxu0 0.0
        %369 = vmatpush1.xpose.msra.mxu0 0.0
        %370 = vmatprep.subr.mxu0 0.0
        %371 = vmatpush1.xpose.msra.mxu0 0.0
        %372 = vmatprep.subr.mxu0 0.0
        %373 = vmatpush1.xpose.msra.mxu0 0.0
        %374 = vmatprep.subr.mxu0 0.0
        %375 = vmatpush1.xpose.msra.mxu0 0.0
        %376 = vmatprep.subr.mxu0 0.0
        %377 = vmatpush1.xpose.msra.mxu0 0.0
        %378 = vmatprep.subr.mxu0 0.0
        %379 = vmatpush1.xpose.msra.mxu0 0.0
        %380 = vmatprep.subr.mxu0 0.0
        %381 = vmatpush1.xpose.msra.mxu0 0.0
        %382 = vmatprep.subr.mxu0 0.0
        %383 = vmatpush1.xpose.msra.mxu0 0.0
        %384 = vmatprep.subr.mxu0 0.0
        %385 = vmatpush1.xpose.msra.mxu0 0.0
        %386 = vmatprep.subr.mxu0 0.0
        %387 = vmatpush1.xpose.msra.mxu0 0.0
        %388 = vmatprep.subr.mxu0 0.0
        %389 = vmatpush1.xpose.msra.mxu0 0.0
        %390 = vmatprep.subr.mxu0 0.0
        %391 = vmatpush1.xpose.msra.mxu0 0.0
        %392 = vmatprep.subr.mxu0 0.0
        %393 = vmatpush1.xpose.msra.mxu0 0.0
        %394 = vmatprep.mubr.f32.mxu0 0.0
        %395 = vmatmul.mubr.f32.gmra.mrb[0].mxu0 %v325
        %v396 = vpop.f32.mrb[0].mxu0
        %v397 = vadd.f32 0.0, %v396
        %v398 = vpop.f32.mrb[0].mxu0
        %399 = vdwg.mxu0
        %vm400 = vcmask 64512
        %v401 = vsel %vm400, %v397, -inf
        %402 = vmax.xlane.f32.xlu0 %v401
        %v403 = vpop.xlane.xlu0 %402
        %v404 = vsub.f32 %v397, %v403
        %v405 = vmul.f32 %v404, 1.442695
        %v406 = vpow.pop %v405
        %v407 = vsel %vm400, %v406, 0.0
        %408 = vadd.xlane.f32.xlu0 %v407
        %v409 = vpop.xlane.xlu0 %408
        %v410 = vrcp.pop %v409
        %v411 = vmul.f32 %v406, %v410
        %v413 = vsel %vm400, %v411, 0
        %415 = vmatprep.subr.mxu0 0.0
        %416 = vmatpush1.msra.mxu0 %v321
        %417 = vmatprep.subr.mxu0 0.0
        %418 = vmatpush1.msra.mxu0 0.0
        %419 = vmatprep.subr.mxu0 0.0
        %420 = vmatpush1.msra.mxu0 0.0
        %421 = vmatprep.subr.mxu0 0.0
        %422 = vmatpush1.msra.mxu0 0.0
        %423 = vmatprep.subr.mxu0 0.0
        %424 = vmatpush1.msra.mxu0 0.0
        %425 = vmatprep.subr.mxu0 0.0
        %426 = vmatpush1.msra.mxu0 0.0
        %427 = vmatprep.subr.mxu0 0.0
        %428 = vmatpush1.msra.mxu0 0.0
        %429 = vmatprep.subr.mxu0 0.0
        %430 = vmatpush1.msra.mxu0 0.0
        %431 = vmatprep.subr.mxu0 0.0
        %432 = vmatpush1.msra.mxu0 0.0
        %433 = vmatprep.subr.mxu0 0.0
        %434 = vmatpush1.msra.mxu0 0.0
        %435 = vmatprep.subr.mxu0 0.0
        %436 = vmatpush1.msra.mxu0 0.0
        %437 = vmatprep.subr.mxu0 0.0
        %438 = vmatpush1.msra.mxu0 0.0
        %439 = vmatprep.subr.mxu0 0.0
        %440 = vmatpush1.msra.mxu0 0.0
        %441 = vmatprep.subr.mxu0 0.0
        %442 = vmatpush1.msra.mxu0 0.0
        %443 = vmatprep.subr.mxu0 0.0
        %444 = vmatpush1.msra.mxu0 0.0
        %445 = vmatprep.subr.mxu0 0.0
        %446 = vmatpush1.msra.mxu0 0.0
        %447 = vmatprep.subr.mxu0 0.0
        %448 = vmatpush1.msra.mxu0 0.0
        %449 = vmatprep.subr.mxu0 0.0
        %450 = vmatpush1.msra.mxu0 0.0
        %451 = vmatprep.subr.mxu0 0.0
        %452 = vmatpush1.msra.mxu0 0.0
        %453 = vmatprep.subr.mxu0 0.0
        %454 = vmatpush1.msra.mxu0 0.0
        %455 = vmatprep.subr.mxu0 0.0
        %456 = vmatpush1.msra.mxu0 0.0
        %457 = vmatprep.subr.mxu0 0.0
        %458 = vmatpush1.msra.mxu0 0.0
        %459 = vmatprep.subr.mxu0 0.0
        %460 = vmatpush1.msra.mxu0 0.0
        %461 = vmatprep.subr.mxu0 0.0
        %462 = vmatpush1.msra.mxu0 0.0
        %463 = vmatprep.subr.mxu0 0.0
        %464 = vmatpush1.msra.mxu0 0.0
        %465 = vmatprep.subr.mxu0 0.0
        %466 = vmatpush1.msra.mxu0 0.0
        %467 = vmatprep.subr.mxu0 0.0
        %468 = vmatpush1.msra.mxu0 0.0
        %469 = vmatprep.subr.mxu0 0.0
        %470 = vmatpush1.msra.mxu0 0.0
        %471 = vmatprep.subr.mxu0 0.0
        %472 = vmatpush1.msra.mxu0 0.0
        %473 = vmatprep.subr.mxu0 0.0
        %474 = vmatpush1.msra.mxu0 0.0
        %475 = vmatprep.subr.mxu0 0.0
        %476 = vmatpush1.msra.mxu0 0.0
        %477 = vmatprep.subr.mxu0 0.0
        %478 = vmatpush1.msra.mxu0 0.0
        %479 = vmatprep.mubr.f32.mxu0 0.0
        %480 = vmatmul.mubr.f32.gmra.mrb[0].mxu0 %v413
        %v481 = vpop.f32.mrb[0].mxu0
        %v482 = vadd.f32 0.0, %v481
        %v483 = vpop.f32.mrb[0].mxu0
        %484 = vdwg.mxu0
        %485 = vrot.lane.b32.xlu0 %v250, 96
        %v486 = vpop.permute.xlu0 %485
        %487 = vrot.lane.b32.xlu0 %v252, 96
        %v488 = vpop.permute.xlu0 %487
        %v489 = vsel %vm179, %v486, 0
        %v491 = vsel %vm179, %v488, 0
        %493 = vmatprep.subr.mxu0 0.0
        %494 = vmatpush1.xpose.msra.mxu0 %v491
        %495 = vmatprep.subr.mxu0 0.0
        %496 = vmatpush1.xpose.msra.mxu0 0.0
        %497 = vmatprep.subr.mxu0 0.0
        %498 = vmatpush1.xpose.msra.mxu0 0.0
        %499 = vmatprep.subr.mxu0 0.0
        %500 = vmatpush1.xpose.msra.mxu0 0.0
        %501 = vmatprep.subr.mxu0 0.0
        %502 = vmatpush1.xpose.msra.mxu0 0.0
        %503 = vmatprep.subr.mxu0 0.0
        %504 = vmatpush1.xpose.msra.mxu0 0.0
        %505 = vmatprep.subr.mxu0 0.0
        %506 = vmatpush1.xpose.msra.mxu0 0.0
        %507 = vmatprep.subr.mxu0 0.0
        %508 = vmatpush1.xpose.msra.mxu0 0.0
        %509 = vmatprep.subr.mxu0 0.0
        %510 = vmatpush1.xpose.msra.mxu0 0.0
        %511 = vmatprep.subr.mxu0 0.0
        %512 = vmatpush1.xpose.msra.mxu0 0.0
        %513 = vmatprep.subr.mxu0 0.0
        %514 = vmatpush1.xpose.msra.mxu0 0.0
        %515 = vmatprep.subr.mxu0 0.0
        %516 = vmatpush1.xpose.msra.mxu0 0.0
        %517 = vmatprep.subr.mxu0 0.0
        %518 = vmatpush1.xpose.msra.mxu0 0.0
        %519 = vmatprep.subr.mxu0 0.0
        %520 = vmatpush1.xpose.msra.mxu0 0.0
        %521 = vmatprep.subr.mxu0 0.0
        %522 = vmatpush1.xpose.msra.mxu0 0.0
        %523 = vmatprep.subr.mxu0 0.0
        %524 = vmatpush1.xpose.msra.mxu0 0.0
        %525 = vmatprep.subr.mxu0 0.0
        %526 = vmatpush1.xpose.msra.mxu0 0.0
        %527 = vmatprep.subr.mxu0 0.0
        %528 = vmatpush1.xpose.msra.mxu0 0.0
        %529 = vmatprep.subr.mxu0 0.0
        %530 = vmatpush1.xpose.msra.mxu0 0.0
        %531 = vmatprep.subr.mxu0 0.0
        %532 = vmatpush1.xpose.msra.mxu0 0.0
        %533 = vmatprep.subr.mxu0 0.0
        %534 = vmatpush1.xpose.msra.mxu0 0.0
        %535 = vmatprep.subr.mxu0 0.0
        %536 = vmatpush1.xpose.msra.mxu0 0.0
        %537 = vmatprep.subr.mxu0 0.0
        %538 = vmatpush1.xpose.msra.mxu0 0.0
        %539 = vmatprep.subr.mxu0 0.0
        %540 = vmatpush1.xpose.msra.mxu0 0.0
        %541 = vmatprep.subr.mxu0 0.0
        %542 = vmatpush1.xpose.msra.mxu0 0.0
        %543 = vmatprep.subr.mxu0 0.0
        %544 = vmatpush1.xpose.msra.mxu0 0.0
        %545 = vmatprep.subr.mxu0 0.0
        %546 = vmatpush1.xpose.msra.mxu0 0.0
        %547 = vmatprep.subr.mxu0 0.0
        %548 = vmatpush1.xpose.msra.mxu0 0.0
        %549 = vmatprep.subr.mxu0 0.0
        %550 = vmatpush1.xpose.msra.mxu0 0.0
        %551 = vmatprep.subr.mxu0 0.0
        %552 = vmatpush1.xpose.msra.mxu0 0.0
        %553 = vmatprep.subr.mxu0 0.0
        %554 = vmatpush1.xpose.msra.mxu0 0.0
        %555 = vmatprep.subr.mxu0 0.0
        %556 = vmatpush1.xpose.msra.mxu0 0.0
        %557 = vmatprep.mubr.f32.mxu0 0.0
        %558 = vmatmul.mubr.f32.gmra.mrb[0].mxu0 %v489
        %v559 = vpop.f32.mrb[0].mxu0
        %v560 = vadd.f32 0.0, %v559
        %v561 = vpop.f32.mrb[0].mxu0
        %562 = vdwg.mxu0
        %v563 = vsel %vm400, %v560, -inf
        %564 = vmax.xlane.f32.xlu0 %v563
        %v565 = vpop.xlane.xlu0 %564
        %v566 = vsub.f32 %v560, %v565
        %v567 = vmul.f32 %v566, 1.442695
        %v568 = vpow.pop %v567
        %v569 = vsel %vm400, %v568, 0.0
        %570 = vadd.xlane.f32.xlu0 %v569
        %v571 = vpop.xlane.xlu0 %570
        %v572 = vrcp.pop %v571
        %v573 = vmul.f32 %v568, %v572
        %575 = vrot.lane.b32.xlu0 %v321, 96
        %v576 = vpop.permute.xlu0 %575
        %v579 = vsel %vm400, %v573, 0
        %581 = vmatprep.subr.mxu0 0.0
        %582 = vmatpush1.msra.mxu0 %v576
        %583 = vmatprep.subr.mxu0 0.0
        %584 = vmatpush1.msra.mxu0 0.0
        %585 = vmatprep.subr.mxu0 0.0
        %586 = vmatpush1.msra.mxu0 0.0
        %587 = vmatprep.subr.mxu0 0.0
        %588 = vmatpush1.msra.mxu0 0.0
        %589 = vmatprep.subr.mxu0 0.0
        %590 = vmatpush1.msra.mxu0 0.0
        %591 = vmatprep.subr.mxu0 0.0
        %592 = vmatpush1.msra.mxu0 0.0
        %593 = vmatprep.subr.mxu0 0.0
        %594 = vmatpush1.msra.mxu0 0.0
        %595 = vmatprep.subr.mxu0 0.0
        %596 = vmatpush1.msra.mxu0 0.0
        %597 = vmatprep.subr.mxu0 0.0
        %598 = vmatpush1.msra.mxu0 0.0
        %599 = vmatprep.subr.mxu0 0.0
        %600 = vmatpush1.msra.mxu0 0.0
        %601 = vmatprep.subr.mxu0 0.0
        %602 = vmatpush1.msra.mxu0 0.0
        %603 = vmatprep.subr.mxu0 0.0
        %604 = vmatpush1.msra.mxu0 0.0
        %605 = vmatprep.subr.mxu0 0.0
        %606 = vmatpush1.msra.mxu0 0.0
        %607 = vmatprep.subr.mxu0 0.0
        %608 = vmatpush1.msra.mxu0 0.0
        %609 = vmatprep.subr.mxu0 0.0
        %610 = vmatpush1.msra.mxu0 0.0
        %611 = vmatprep.subr.mxu0 0.0
        %612 = vmatpush1.msra.mxu0 0.0
        %613 = vmatprep.subr.mxu0 0.0
        %614 = vmatpush1.msra.mxu0 0.0
        %615 = vmatprep.subr.mxu0 0.0
        %616 = vmatpush1.msra.mxu0 0.0
        %617 = vmatprep.subr.mxu0 0.0
        %618 = vmatpush1.msra.mxu0 0.0
        %619 = vmatprep.subr.mxu0 0.0
        %620 = vmatpush1.msra.mxu0 0.0
        %621 = vmatprep.subr.mxu0 0.0
        %622 = vmatpush1.msra.mxu0 0.0
        %623 = vmatprep.subr.mxu0 0.0
        %624 = vmatpush1.msra.mxu0 0.0
        %625 = vmatprep.subr.mxu0 0.0
        %626 = vmatpush1.msra.mxu0 0.0
        %627 = vmatprep.subr.mxu0 0.0
        %628 = vmatpush1.msra.mxu0 0.0
        %629 = vmatprep.subr.mxu0 0.0
        %630 = vmatpush1.msra.mxu0 0.0
        %631 = vmatprep.subr.mxu0 0.0
        %632 = vmatpush1.msra.mxu0 0.0
        %633 = vmatprep.subr.mxu0 0.0
        %634 = vmatpush1.msra.mxu0 0.0
        %635 = vmatprep.subr.mxu0 0.0
        %636 = vmatpush1.msra.mxu0 0.0
        %637 = vmatprep.subr.mxu0 0.0
        %638 = vmatpush1.msra.mxu0 0.0
        %639 = vmatprep.subr.mxu0 0.0
        %640 = vmatpush1.msra.mxu0 0.0
        %641 = vmatprep.subr.mxu0 0.0
        %642 = vmatpush1.msra.mxu0 0.0
        %643 = vmatprep.subr.mxu0 0.0
        %644 = vmatpush1.msra.mxu0 0.0
        %645 = vmatprep.mubr.f32.mxu0 0.0
        %646 = vmatmul.mubr.f32.gmra.mrb[0].mxu0 %v579
        %v647 = vpop.f32.mrb[0].mxu0
        %v648 = vadd.f32 0.0, %v647
        %v649 = vpop.f32.mrb[0].mxu0
        %650 = vdwg.mxu0
        %651 = vrot.lane.b32.xlu0 %v250, 64
        %v652 = vpop.permute.xlu0 %651
        %653 = vrot.lane.b32.xlu0 %v252, 64
        %v654 = vpop.permute.xlu0 %653
        %v655 = vsel %vm179, %v652, 0
        %v657 = vsel %vm179, %v654, 0
        %659 = vmatprep.subr.mxu0 0.0
        %660 = vmatpush1.xpose.msra.mxu0 %v657
        %661 = vmatprep.subr.mxu0 0.0
        %662 = vmatpush1.xpose.msra.mxu0 0.0
        %663 = vmatprep.subr.mxu0 0.0
        %664 = vmatpush1.xpose.msra.mxu0 0.0
        %665 = vmatprep.subr.mxu0 0.0
        %666 = vmatpush1.xpose.msra.mxu0 0.0
        %667 = vmatprep.subr.mxu0 0.0
        %668 = vmatpush1.xpose.msra.mxu0 0.0
        %669 = vmatprep.subr.mxu0 0.0
        %670 = vmatpush1.xpose.msra.mxu0 0.0
        %671 = vmatprep.subr.mxu0 0.0
        %672 = vmatpush1.xpose.msra.mxu0 0.0
        %673 = vmatprep.subr.mxu0 0.0
        %674 = vmatpush1.xpose.msra.mxu0 0.0
        %675 = vmatprep.subr.mxu0 0.0
        %676 = vmatpush1.xpose.msra.mxu0 0.0
        %677 = vmatprep.subr.mxu0 0.0
        %678 = vmatpush1.xpose.msra.mxu0 0.0
        %679 = vmatprep.subr.mxu0 0.0
        %680 = vmatpush1.xpose.msra.mxu0 0.0
        %681 = vmatprep.subr.mxu0 0.0
        %682 = vmatpush1.xpose.msra.mxu0 0.0
        %683 = vmatprep.subr.mxu0 0.0
        %684 = vmatpush1.xpose.msra.mxu0 0.0
        %685 = vmatprep.subr.mxu0 0.0
        %686 = vmatpush1.xpose.msra.mxu0 0.0
        %687 = vmatprep.subr.mxu0 0.0
        %688 = vmatpush1.xpose.msra.mxu0 0.0
        %689 = vmatprep.subr.mxu0 0.0
        %690 = vmatpush1.xpose.msra.mxu0 0.0
        %691 = vmatprep.subr.mxu0 0.0
        %692 = vmatpush1.xpose.msra.mxu0 0.0
        %693 = vmatprep.subr.mxu0 0.0
        %694 = vmatpush1.xpose.msra.mxu0 0.0
        %695 = vmatprep.subr.mxu0 0.0
        %696 = vmatpush1.xpose.msra.mxu0 0.0
        %697 = vmatprep.subr.mxu0 0.0
        %698 = vmatpush1.xpose.msra.mxu0 0.0
        %699 = vmatprep.subr.mxu0 0.0
        %700 = vmatpush1.xpose.msra.mxu0 0.0
        %701 = vmatprep.subr.mxu0 0.0
        %702 = vmatpush1.xpose.msra.mxu0 0.0
        %703 = vmatprep.subr.mxu0 0.0
        %704 = vmatpush1.xpose.msra.mxu0 0.0
        %705 = vmatprep.subr.mxu0 0.0
        %706 = vmatpush1.xpose.msra.mxu0 0.0
        %707 = vmatprep.subr.mxu0 0.0
        %708 = vmatpush1.xpose.msra.mxu0 0.0
        %709 = vmatprep.subr.mxu0 0.0
        %710 = vmatpush1.xpose.msra.mxu0 0.0
        %711 = vmatprep.subr.mxu0 0.0
        %712 = vmatpush1.xpose.msra.mxu0 0.0
        %713 = vmatprep.subr.mxu0 0.0
        %714 = vmatpush1.xpose.msra.mxu0 0.0
        %715 = vmatprep.subr.mxu0 0.0
        %716 = vmatpush1.xpose.msra.mxu0 0.0
        %717 = vmatprep.subr.mxu0 0.0
        %718 = vmatpush1.xpose.msra.mxu0 0.0
        %719 = vmatprep.subr.mxu0 0.0
        %720 = vmatpush1.xpose.msra.mxu0 0.0
        %721 = vmatprep.subr.mxu0 0.0
        %722 = vmatpush1.xpose.msra.mxu0 0.0
        %723 = vmatprep.mubr.f32.mxu0 0.0
        %724 = vmatmul.mubr.f32.gmra.mrb[0].mxu0 %v655
        %v725 = vpop.f32.mrb[0].mxu0
        %v726 = vadd.f32 0.0, %v725
        %v727 = vpop.f32.mrb[0].mxu0
        %728 = vdwg.mxu0
        %v729 = vsel %vm400, %v726, -inf
        %730 = vmax.xlane.f32.xlu0 %v729
        %v731 = vpop.xlane.xlu0 %730
        %v732 = vsub.f32 %v726, %v731
        %v733 = vmul.f32 %v732, 1.442695
        %v734 = vpow.pop %v733
        %v735 = vsel %vm400, %v734, 0.0
        %736 = vadd.xlane.f32.xlu0 %v735
        %v737 = vpop.xlane.xlu0 %736
        %v738 = vrcp.pop %v737
        %v739 = vmul.f32 %v734, %v738
        %740 = vrot.lane.b32.xlu0 %v321, 64
        %v741 = vpop.permute.xlu0 %740
        %v744 = vsel %vm400, %v739, 0
        %746 = vmatprep.subr.mxu0 0.0
        %747 = vmatpush1.msra.mxu0 %v741
        %748 = vmatprep.subr.mxu0 0.0
        %749 = vmatpush1.msra.mxu0 0.0
        %750 = vmatprep.subr.mxu0 0.0
        %751 = vmatpush1.msra.mxu0 0.0
        %752 = vmatprep.subr.mxu0 0.0
        %753 = vmatpush1.msra.mxu0 0.0
        %754 = vmatprep.subr.mxu0 0.0
        %755 = vmatpush1.msra.mxu0 0.0
        %756 = vmatprep.subr.mxu0 0.0
        %757 = vmatpush1.msra.mxu0 0.0
        %758 = vmatprep.subr.mxu0 0.0
        %759 = vmatpush1.msra.mxu0 0.0
        %760 = vmatprep.subr.mxu0 0.0
        %761 = vmatpush1.msra.mxu0 0.0
        %762 = vmatprep.subr.mxu0 0.0
        %763 = vmatpush1.msra.mxu0 0.0
        %764 = vmatprep.subr.mxu0 0.0
        %765 = vmatpush1.msra.mxu0 0.0
        %766 = vmatprep.subr.mxu0 0.0
        %767 = vmatpush1.msra.mxu0 0.0
        %768 = vmatprep.subr.mxu0 0.0
        %769 = vmatpush1.msra.mxu0 0.0
        %770 = vmatprep.subr.mxu0 0.0
        %771 = vmatpush1.msra.mxu0 0.0
        %772 = vmatprep.subr.mxu0 0.0
        %773 = vmatpush1.msra.mxu0 0.0
        %774 = vmatprep.subr.mxu0 0.0
        %775 = vmatpush1.msra.mxu0 0.0
        %776 = vmatprep.subr.mxu0 0.0
        %777 = vmatpush1.msra.mxu0 0.0
        %778 = vmatprep.subr.mxu0 0.0
        %779 = vmatpush1.msra.mxu0 0.0
        %780 = vmatprep.subr.mxu0 0.0
        %781 = vmatpush1.msra.mxu0 0.0
        %782 = vmatprep.subr.mxu0 0.0
        %783 = vmatpush1.msra.mxu0 0.0
        %784 = vmatprep.subr.mxu0 0.0
        %785 = vmatpush1.msra.mxu0 0.0
        %786 = vmatprep.subr.mxu0 0.0
        %787 = vmatpush1.msra.mxu0 0.0
        %788 = vmatprep.subr.mxu0 0.0
        %789 = vmatpush1.msra.mxu0 0.0
        %790 = vmatprep.subr.mxu0 0.0
        %791 = vmatpush1.msra.mxu0 0.0
        %792 = vmatprep.subr.mxu0 0.0
        %793 = vmatpush1.msra.mxu0 0.0
        %794 = vmatprep.subr.mxu0 0.0
        %795 = vmatpush1.msra.mxu0 0.0
        %796 = vmatprep.subr.mxu0 0.0
        %797 = vmatpush1.msra.mxu0 0.0
        %798 = vmatprep.subr.mxu0 0.0
        %799 = vmatpush1.msra.mxu0 0.0
        %800 = vmatprep.subr.mxu0 0.0
        %801 = vmatpush1.msra.mxu0 0.0
        %802 = vmatprep.subr.mxu0 0.0
        %803 = vmatpush1.msra.mxu0 0.0
        %804 = vmatprep.subr.mxu0 0.0
        %805 = vmatpush1.msra.mxu0 0.0
        %806 = vmatprep.subr.mxu0 0.0
        %807 = vmatpush1.msra.mxu0 0.0
        %808 = vmatprep.subr.mxu0 0.0
        %809 = vmatpush1.msra.mxu0 0.0
        %810 = vmatprep.mubr.f32.mxu0 0.0
        %811 = vmatmul.mubr.f32.gmra.mrb[0].mxu0 %v744
        %v812 = vpop.f32.mrb[0].mxu0
        %v813 = vadd.f32 0.0, %v812
        %v814 = vpop.f32.mrb[0].mxu0
        %815 = vdwg.mxu0
        %816 = vrot.lane.b32.xlu0 %v250, 32
        %v817 = vpop.permute.xlu0 %816
        %818 = vrot.lane.b32.xlu0 %v252, 32
        %v819 = vpop.permute.xlu0 %818
        %v820 = vsel %vm179, %v817, 0
        %v822 = vsel %vm179, %v819, 0
        %824 = vmatprep.subr.mxu0 0.0
        %825 = vmatpush1.xpose.msra.mxu0 %v822
        %826 = vmatprep.subr.mxu0 0.0
        %827 = vmatpush1.xpose.msra.mxu0 0.0
        %828 = vmatprep.subr.mxu0 0.0
        %829 = vmatpush1.xpose.msra.mxu0 0.0
        %830 = vmatprep.subr.mxu0 0.0
        %831 = vmatpush1.xpose.msra.mxu0 0.0
        %832 = vmatprep.subr.mxu0 0.0
        %833 = vmatpush1.xpose.msra.mxu0 0.0
        %834 = vmatprep.subr.mxu0 0.0
        %835 = vmatpush1.xpose.msra.mxu0 0.0
        %836 = vmatprep.subr.mxu0 0.0
        %837 = vmatpush1.xpose.msra.mxu0 0.0
        %838 = vmatprep.subr.mxu0 0.0
        %839 = vmatpush1.xpose.msra.mxu0 0.0
        %840 = vmatprep.subr.mxu0 0.0
        %841 = vmatpush1.xpose.msra.mxu0 0.0
        %842 = vmatprep.subr.mxu0 0.0
        %843 = vmatpush1.xpose.msra.mxu0 0.0
        %844 = vmatprep.subr.mxu0 0.0
        %845 = vmatpush1.xpose.msra.mxu0 0.0
        %846 = vmatprep.subr.mxu0 0.0
        %847 = vmatpush1.xpose.msra.mxu0 0.0
        %848 = vmatprep.subr.mxu0 0.0
        %849 = vmatpush1.xpose.msra.mxu0 0.0
        %850 = vmatprep.subr.mxu0 0.0
        %851 = vmatpush1.xpose.msra.mxu0 0.0
        %852 = vmatprep.subr.mxu0 0.0
        %853 = vmatpush1.xpose.msra.mxu0 0.0
        %854 = vmatprep.subr.mxu0 0.0
        %855 = vmatpush1.xpose.msra.mxu0 0.0
        %856 = vmatprep.subr.mxu0 0.0
        %857 = vmatpush1.xpose.msra.mxu0 0.0
        %858 = vmatprep.subr.mxu0 0.0
        %859 = vmatpush1.xpose.msra.mxu0 0.0
        %860 = vmatprep.subr.mxu0 0.0
        %861 = vmatpush1.xpose.msra.mxu0 0.0
        %862 = vmatprep.subr.mxu0 0.0
        %863 = vmatpush1.xpose.msra.mxu0 0.0
        %864 = vmatprep.subr.mxu0 0.0
        %865 = vmatpush1.xpose.msra.mxu0 0.0
        %866 = vmatprep.subr.mxu0 0.0
        %867 = vmatpush1.xpose.msra.mxu0 0.0
        %868 = vmatprep.subr.mxu0 0.0
        %869 = vmatpush1.xpose.msra.mxu0 0.0
        %870 = vmatprep.subr.mxu0 0.0
        %871 = vmatpush1.xpose.msra.mxu0 0.0
        %872 = vmatprep.subr.mxu0 0.0
        %873 = vmatpush1.xpose.msra.mxu0 0.0
        %874 = vmatprep.subr.mxu0 0.0
        %875 = vmatpush1.xpose.msra.mxu0 0.0
        %876 = vmatprep.subr.mxu0 0.0
        %877 = vmatpush1.xpose.msra.mxu0 0.0
        %878 = vmatprep.subr.mxu0 0.0
        %879 = vmatpush1.xpose.msra.mxu0 0.0
        %880 = vmatprep.subr.mxu0 0.0
        %881 = vmatpush1.xpose.msra.mxu0 0.0
        %882 = vmatprep.subr.mxu0 0.0
        %883 = vmatpush1.xpose.msra.mxu0 0.0
        %884 = vmatprep.subr.mxu0 0.0
        %885 = vmatpush1.xpose.msra.mxu0 0.0
        %886 = vmatprep.subr.mxu0 0.0
        %887 = vmatpush1.xpose.msra.mxu0 0.0
        %888 = vmatprep.mubr.f32.mxu0 0.0
        %889 = vmatmul.mubr.f32.gmra.mrb[0].mxu0 %v820
        %v890 = vpop.f32.mrb[0].mxu0
        %v891 = vadd.f32 0.0, %v890
        %v892 = vpop.f32.mrb[0].mxu0
        %893 = vdwg.mxu0
        %v894 = vsel %vm400, %v891, -inf
        %895 = vmax.xlane.f32.xlu0 %v894
        %v896 = vpop.xlane.xlu0 %895
        %v897 = vsub.f32 %v891, %v896
        %v898 = vmul.f32 %v897, 1.442695
        %v899 = vpow.pop %v898
        %v900 = vsel %vm400, %v899, 0.0
        %901 = vadd.xlane.f32.xlu0 %v900
        %v902 = vpop.xlane.xlu0 %901
        %v903 = vrcp.pop %v902
        %v904 = vmul.f32 %v899, %v903
        %905 = vrot.lane.b32.xlu0 %v321, 32
        %v906 = vpop.permute.xlu0 %905
        %v909 = vsel %vm400, %v904, 0
        %911 = vmatprep.subr.mxu0 0.0
        %912 = vmatpush1.msra.mxu0 %v906
        %913 = vmatprep.subr.mxu0 0.0
        %914 = vmatpush1.msra.mxu0 0.0
        %915 = vmatprep.subr.mxu0 0.0
        %916 = vmatpush1.msra.mxu0 0.0
        %917 = vmatprep.subr.mxu0 0.0
        %918 = vmatpush1.msra.mxu0 0.0
        %919 = vmatprep.subr.mxu0 0.0
        %920 = vmatpush1.msra.mxu0 0.0
        %921 = vmatprep.subr.mxu0 0.0
        %922 = vmatpush1.msra.mxu0 0.0
        %923 = vmatprep.subr.mxu0 0.0
        %924 = vmatpush1.msra.mxu0 0.0
        %925 = vmatprep.subr.mxu0 0.0
        %926 = vmatpush1.msra.mxu0 0.0
        %927 = vmatprep.subr.mxu0 0.0
        %928 = vmatpush1.msra.mxu0 0.0
        %929 = vmatprep.subr.mxu0 0.0
        %930 = vmatpush1.msra.mxu0 0.0
        %931 = vmatprep.subr.mxu0 0.0
        %932 = vmatpush1.msra.mxu0 0.0
        %933 = vmatprep.subr.mxu0 0.0
        %934 = vmatpush1.msra.mxu0 0.0
        %935 = vmatprep.subr.mxu0 0.0
        %936 = vmatpush1.msra.mxu0 0.0
        %937 = vmatprep.subr.mxu0 0.0
        %938 = vmatpush1.msra.mxu0 0.0
        %939 = vmatprep.subr.mxu0 0.0
        %940 = vmatpush1.msra.mxu0 0.0
        %941 = vmatprep.subr.mxu0 0.0
        %942 = vmatpush1.msra.mxu0 0.0
        %943 = vmatprep.subr.mxu0 0.0
        %944 = vmatpush1.msra.mxu0 0.0
        %945 = vmatprep.subr.mxu0 0.0
        %946 = vmatpush1.msra.mxu0 0.0
        %947 = vmatprep.subr.mxu0 0.0
        %948 = vmatpush1.msra.mxu0 0.0
        %949 = vmatprep.subr.mxu0 0.0
        %950 = vmatpush1.msra.mxu0 0.0
        %951 = vmatprep.subr.mxu0 0.0
        %952 = vmatpush1.msra.mxu0 0.0
        %953 = vmatprep.subr.mxu0 0.0
        %954 = vmatpush1.msra.mxu0 0.0
        %955 = vmatprep.subr.mxu0 0.0
        %956 = vmatpush1.msra.mxu0 0.0
        %957 = vmatprep.subr.mxu0 0.0
        %958 = vmatpush1.msra.mxu0 0.0
        %959 = vmatprep.subr.mxu0 0.0
        %960 = vmatpush1.msra.mxu0 0.0
        %961 = vmatprep.subr.mxu0 0.0
        %962 = vmatpush1.msra.mxu0 0.0
        %963 = vmatprep.subr.mxu0 0.0
        %964 = vmatpush1.msra.mxu0 0.0
        %965 = vmatprep.subr.mxu0 0.0
        %966 = vmatpush1.msra.mxu0 0.0
        %967 = vmatprep.subr.mxu0 0.0
        %968 = vmatpush1.msra.mxu0 0.0
        %969 = vmatprep.subr.mxu0 0.0
        %970 = vmatpush1.msra.mxu0 0.0
        %971 = vmatprep.subr.mxu0 0.0
        %972 = vmatpush1.msra.mxu0 0.0
        %973 = vmatprep.subr.mxu0 0.0
        %974 = vmatpush1.msra.mxu0 0.0
        %975 = vmatprep.mubr.f32.mxu0 0.0
        %976 = vmatmul.mubr.f32.gmra.mrb[0].mxu0 %v909
        %v977 = vpop.f32.mrb[0].mxu0
        %v978 = vadd.f32 0.0, %v977
        %v979 = vpop.f32.mrb[0].mxu0
        %980 = vdwg.mxu0
        %982 = vrot.lane.b32.xlu0 %v648, 32
        %v983 = vpop.permute.xlu0 %982
        %986 = vrot.lane.b32.xlu0 %v813, 64
        %v987 = vpop.permute.xlu0 %986
        %990 = vrot.lane.b32.xlu0 %v978, 96
        %v991 = vpop.permute.xlu0 %990
        %v993 = vsel %vm179, %v482, %v983
        %vm994 = vcmask 523264
        %v995 = vsel %vm994, %v993, %v987
        %vm996 = vcmask 785408
        %v997 = vsel %vm996, %v995, %v991
        %v998 = vld [vmem:[%s2] sm:$0xff]
        %v999 = vld [vmem:[%s2 + $0x8] sm:$0xff]
        %v1000 = vld [vmem:[%s2 + $0x10] sm:$0xff]
        %v1001 = vld [vmem:[%s2 + $0x18] sm:$0xff]
        %v1002 = vld [vmem:[%s2 + $0x20] sm:$0xff]
        %v1003 = vld [vmem:[%s2 + $0x28] sm:$0xff]
        %v1004 = vld [vmem:[%s2 + $0x30] sm:$0xff]
        %v1005 = vld [vmem:[%s2 + $0x38] sm:$0xff]
        %v1006 = vld [vmem:[%s2 + $0x40] sm:$0xff]
        %v1007 = vld [vmem:[%s2 + $0x48] sm:$0xff]
        %v1008 = vld [vmem:[%s2 + $0x50] sm:$0xff]
        %v1009 = vld [vmem:[%s2 + $0x58] sm:$0xff]
        %v1010 = vld [vmem:[%s2 + $0x60] sm:$0xff]
        %v1011 = vld [vmem:[%s2 + $0x68] sm:$0xff]
        %v1012 = vld [vmem:[%s2 + $0x70] sm:$0xff]
        %v1013 = vld [vmem:[%s2 + $0x78] sm:$0xff]
        %1014 = vmatprep.subr.mxu0 0.0
        %1015 = vmatpush1.msra.mxu0 %v998
        %1016 = vmatprep.subr.mxu0 0.0
        %1017 = vmatpush1.msra.mxu0 %v999
        %1018 = vmatprep.subr.mxu0 0.0
        %1019 = vmatpush1.msra.mxu0 %v1000
        %1020 = vmatprep.subr.mxu0 0.0
        %1021 = vmatpush1.msra.mxu0 %v1001
        %1022 = vmatprep.subr.mxu0 0.0
        %1023 = vmatpush1.msra.mxu0 %v1002
        %1024 = vmatprep.subr.mxu0 0.0
        %1025 = vmatpush1.msra.mxu0 %v1003
        %1026 = vmatprep.subr.mxu0 0.0
        %1027 = vmatpush1.msra.mxu0 %v1004
        %1028 = vmatprep.subr.mxu0 0.0
        %1029 = vmatpush1.msra.mxu0 %v1005
        %1030 = vmatprep.subr.mxu0 0.0
        %1031 = vmatpush1.msra.mxu0 %v1006
        %1032 = vmatprep.subr.mxu0 0.0
        %1033 = vmatpush1.msra.mxu0 %v1007
        %1034 = vmatprep.subr.mxu0 0.0
        %1035 = vmatpush1.msra.mxu0 %v1008
        %1036 = vmatprep.subr.mxu0 0.0
        %1037 = vmatpush1.msra.mxu0 %v1009
        %1038 = vmatprep.subr.mxu0 0.0
        %1039 = vmatpush1.msra.mxu0 %v1010
        %1040 = vmatprep.subr.mxu0 0.0
        %1041 = vmatpush1.msra.mxu0 %v1011
        %1042 = vmatprep.subr.mxu0 0.0
        %1043 = vmatpush1.msra.mxu0 %v1012
        %1044 = vmatprep.subr.mxu0 0.0
        %1045 = vmatpush1.msra.mxu0 %v1013
        %1046 = vmatprep.subr.mxu0 0.0
        %1047 = vmatpush1.msra.mxu0 0.0
        %1048 = vmatprep.subr.mxu0 0.0
        %1049 = vmatpush1.msra.mxu0 0.0
        %1050 = vmatprep.subr.mxu0 0.0
        %1051 = vmatpush1.msra.mxu0 0.0
        %1052 = vmatprep.subr.mxu0 0.0
        %1053 = vmatpush1.msra.mxu0 0.0
        %1054 = vmatprep.subr.mxu0 0.0
        %1055 = vmatpush1.msra.mxu0 0.0
        %1056 = vmatprep.subr.mxu0 0.0
        %1057 = vmatpush1.msra.mxu0 0.0
        %1058 = vmatprep.subr.mxu0 0.0
        %1059 = vmatpush1.msra.mxu0 0.0
        %1060 = vmatprep.subr.mxu0 0.0
        %1061 = vmatpush1.msra.mxu0 0.0
        %1062 = vmatprep.subr.mxu0 0.0
        %1063 = vmatpush1.msra.mxu0 0.0
        %1064 = vmatprep.subr.mxu0 0.0
        %1065 = vmatpush1.msra.mxu0 0.0
        %1066 = vmatprep.subr.mxu0 0.0
        %1067 = vmatpush1.msra.mxu0 0.0
        %1068 = vmatprep.subr.mxu0 0.0
        %1069 = vmatpush1.msra.mxu0 0.0
        %1070 = vmatprep.subr.mxu0 0.0
        %1071 = vmatpush1.msra.mxu0 0.0
        %1072 = vmatprep.subr.mxu0 0.0
        %1073 = vmatpush1.msra.mxu0 0.0
        %1074 = vmatprep.subr.mxu0 0.0
        %1075 = vmatpush1.msra.mxu0 0.0
        %1076 = vmatprep.subr.mxu0 0.0
        %1077 = vmatpush1.msra.mxu0 0.0
        %1078 = vmatprep.mubr.f32.mxu0 0.0
        %1079 = vmatmul.mubr.f32.gmra.mrb[0].mxu0 %v997
        %v1080 = vpop.f32.mrb[0].mxu0
        %v1081 = vadd.f32 0.0, %v1080
        %v1082 = vpop.f32.mrb[0].mxu0
        %1083 = vdwg.mxu0
        %1084 = vst.msk [vmem:[%s161] sm:$0xff] %vm179, %v1081
        %s1085 = sand.u32 %s93, 1
        %s1086 = scalar_lea.sflag [#allocation3], %s1085
        %s1087 = sand.u32 %s93, 1
        %s1088 = smul.addr %s1087, 8
        %s1089 = scalar_lea.vmem [#allocation2], %s1088
        // Predicated region
        $region33: #{multi_head_attention.1} parent=31 // pred_check
          %p1090 = pneg %p103
        $region34: #{multi_head_attention.1} parent=31 // pred_check_branch
          %1092 = sbr.rel (%p1090) target = $region36
        $region35: #{multi_head_attention.1} parent=31 // pred_region
          %s1094 = ssub.s32 128, 128
          %1095 = vsyncadd %s1086, %s1094
          %s1096 = smul.addr %s17, 128
          %s1097 = scalar_lea.hbm %s3, %s1096
          %s1099 = sshll.u32 %s1089, 4
          %s1100 = int_to_ptr.vmem [resolvable:$true] %s1099
          %1102 = dma.vmem_to_hbm [thread:$0]  %s1100, 128, %s1097, %s1086
        $region36: #{multi_head_attention.1} parent=31 // pred_fallthru
          _
      $region32: #{multi_head_attention.1} parent=5 // pred_fallthru
        _
      %p1103 = scmp.le.s32.totalorder 2, %s12
      // Predicated region
      $region37: #{multi_head_attention.1} parent=5 // pred_check
        %p1104 = pneg %p1103
      $region38: #{multi_head_attention.1} parent=5 // pred_check_branch
        %1106 = sbr.rel (%p1104) target = $region40
      $region39: #{multi_head_attention.1} parent=5 // pred_region
        %s1107 = ssub.s32 %s12, 2
        // Predicated region
        $region41: #{multi_head_attention.1} parent=39 // pred_check
          %p1108 = pneg %p109
        $region42: #{multi_head_attention.1} parent=39 // pred_check_branch
          %1110 = sbr.rel (%p1108) target = $region44
        $region43: #{multi_head_attention.1} parent=39 // pred_region
          %s1111 = sand.u32 %s94, 1
          %s1112 = scalar_lea.sflag [#allocation3], %s1111
          %s1113 = sand.u32 %s94, 1
          %s1114 = smul.addr %s1113, 8
          %s1115 = scalar_lea.vmem [#allocation2], %s1114
          %1116 = dma.done %s1112, 128
        $region44: #{multi_head_attention.1} parent=39 // pred_fallthru
          _
      $region40: #{multi_head_attention.1} parent=5 // pred_fallthru
        _
    $region6: #{multi_head_attention.1} parent=1 // loop_footer
      %s16 = sadd.s32 1, %s12
    $region7: #{multi_head_attention.1} parent=1 // loop_footer_branch
      %11 = sbr.rel target = $region3
    $region8: #{multi_head_attention.1} parent=1 // loop_exit
      _
    %1117 = vsyncpa [#allocation3], 1
    %s1118 = scalar_lea.sflag [#allocation3], 1
    %1119 = vsyncpa %s1118, 1

</llo_original>
